<compile_context>
chip_gen: v7x
topology: tpu7x:2x2x1
jax: 0.10.0
libtpu: 0.0.40
codegen_flags: <defaults>
</compile_context>

<pallas_src>
import functools

import jax
import jax.numpy as jnp
from jax.experimental import pallas as pl
from jax.experimental.pallas import tpu as pltpu

LANES = 128                    # every hidden/output width is padded to one lane register
HIDDEN_DIMS = (16, 32, 32)     # fixed by the DQN module


def _round_up(x, m):
    return (x + m - 1) // m * m


def dqn_kernel(x_ref, w1_ref, w_rest_ref, b_ref, out_ref):
    """relu(relu(relu(x@W1+b1)@W2+b2)@W3+b3)@W4+b4, all widths padded to 128 lanes.

    x_ref      : [TB, input_dim]   streamed per grid step
    w1_ref     : [input_dim, 128]  resident (out dim zero-padded)
    w_rest_ref : [3, 128, 128]     resident (W2..W4, zero-padded)
    b_ref      : [4, 128]          resident (b1..b4, zero-padded)
    out_ref    : [TB, 128]         lane-dense; real Q-values live in [:, :output_dim]

    Padded lanes stay exactly zero through every layer because the padded
    weight rows/cols and bias entries are zero and relu(0) == 0.
    """
    h = jnp.dot(x_ref[...], w1_ref[...], preferred_element_type=jnp.float32)
    h = jnp.maximum(h + b_ref[pl.ds(0, 1), :], 0.0)

    h = jnp.dot(h, w_rest_ref[0], preferred_element_type=jnp.float32)
    h = jnp.maximum(h + b_ref[pl.ds(1, 1), :], 0.0)

    h = jnp.dot(h, w_rest_ref[1], preferred_element_type=jnp.float32)
    h = jnp.maximum(h + b_ref[pl.ds(2, 1), :], 0.0)

    h = jnp.dot(h, w_rest_ref[2], preferred_element_type=jnp.float32)
    out_ref[...] = (h + b_ref[pl.ds(3, 1), :]).astype(out_ref.dtype)


def _pack_params(params, input_dim, output_dim):
    """Pack 8 weight/bias tensors into 3 zero-padded, VMEM-friendly slabs."""
    dims = [(input_dim, HIDDEN_DIMS[0]),
            (HIDDEN_DIMS[0], HIDDEN_DIMS[1]),
            (HIDDEN_DIMS[1], HIDDEN_DIMS[2]),
            (HIDDEN_DIMS[2], output_dim)]

    w1 = jnp.zeros((input_dim, LANES), jnp.float32)
    w1 = w1.at[:, :dims[0][1]].set(params["w1"])

    w_rest = jnp.zeros((3, LANES, LANES), jnp.float32)
    for i in range(3):
        k, n = dims[i + 1]
        w_rest = w_rest.at[i, :k, :n].set(params[f"w{i + 2}"])

    b = jnp.zeros((4, LANES), jnp.float32)
    for i in range(4):
        b = b.at[i, :dims[i][1]].set(params[f"b{i + 1}"])

    return w1, w_rest, b


@functools.partial(jax.jit, static_argnames=("block_batch",))
def dqn_forward(x, params, *, block_batch=512):
    """x: [batch, input_dim] float32; params: dict of W/b (W stored as [in, out])."""
    batch, input_dim = x.shape
    output_dim = params["w4"].shape[1]

    # In a real training loop the packing would be done once, not per call.
    w1, w_rest, b = _pack_params(params, input_dim, output_dim)

    # Stream the batch in tiles; clamp the tile for tiny demo batches.
    tb = min(block_batch, _round_up(batch, 8))
    grid = (pl.cdiv(batch, tb),)

    out_padded = pl.pallas_call(
        dqn_kernel,
        out_shape=jax.ShapeDtypeStruct((batch, LANES), jnp.float32),
        grid_spec=pltpu.PrefetchScalarGridSpec(
            num_scalar_prefetch=0,
            grid=grid,
            in_specs=[
                pl.BlockSpec((tb, input_dim), lambda i: (i, 0)),        # x: streamed
                pl.BlockSpec((input_dim, LANES), lambda i: (0, 0)),     # W1: resident
                pl.BlockSpec((3, LANES, LANES), lambda i: (0, 0, 0)),   # W2..W4: resident
                pl.BlockSpec((4, LANES), lambda i: (0, 0)),             # biases: resident
            ],
            out_specs=pl.BlockSpec((tb, LANES), lambda i: (i, 0)),      # lane-dense out
        ),
        compiler_params=pltpu.CompilerParams(
            dimension_semantics=("parallel",)),  # shard batch over TCs on v7x
    )(x, w1, w_rest, b)

    return out_padded[:, :output_dim]


def init_dqn_params(key, input_dim, output_dim):
    """Deterministic init mimicking PyTorch nn.Linear default (uniform +/- 1/sqrt(fan_in))."""
    dims = [(input_dim, HIDDEN_DIMS[0]),
            (HIDDEN_DIMS[0], HIDDEN_DIMS[1]),
            (HIDDEN_DIMS[1], HIDDEN_DIMS[2]),
            (HIDDEN_DIMS[2], output_dim)]
    params = {}
    for i, (fan_in, fan_out) in enumerate(dims, start=1):
        key, kw, kb = jax.random.split(key, 3)
        bound = 1.0 / (fan_in ** 0.5)
        params[f"w{i}"] = jax.random.uniform(
            kw, (fan_in, fan_out), jnp.float32, minval=-bound, maxval=bound)
        params[f"b{i}"] = jax.random.uniform(
            kb, (fan_out,), jnp.float32, minval=-bound, maxval=bound)
    return params


def dqn_reference(x, params):
    h = jnp.maximum(x @ params["w1"] + params["b1"], 0.0)
    h = jnp.maximum(h @ params["w2"] + params["b2"], 0.0)
    h = jnp.maximum(h @ params["w3"] + params["b3"], 0.0)
    return h @ params["w4"] + params["b4"]


if __name__ == "__main__":
    input_dim, output_dim = 4, 2   # CartPole: 4-dim state, 2 actions

    key = jax.random.PRNGKey(0)
    key, kx_small, kx_big = jax.random.split(key, 3)
    params = init_dqn_params(key, input_dim, output_dim)

    # Small per-step batch (single grid step).
    x_small = jax.random.normal(kx_small, (8, input_dim), dtype=jnp.float32)
    out_small = jax.block_until_ready(dqn_forward(x_small, params))
    ref_small = dqn_reference(x_small, params)
    assert out_small.shape == (8, output_dim)
    assert jnp.allclose(out_small, ref_small, atol=1e-5, rtol=1e-5)

    # Replay-minibatch-sized batch exercising the streaming grid (4 tiles of 512).
    x_big = jax.random.normal(kx_big, (2048, input_dim), dtype=jnp.float32)
    out_big = jax.block_until_ready(dqn_forward(x_big, params))
    ref_big = dqn_reference(x_big, params)
    assert out_big.shape == (2048, output_dim)
    assert jnp.allclose(out_big, ref_big, atol=1e-5, rtol=1e-5)

    print("KERNEL_OK")
</pallas_src>

<mosaic_0001>
module attributes {stable_mosaic.version = 11 : i64} {
  func.func @dqn_kernel(%arg0: i32, %arg1: memref<8x4xf32, #tpu.memory_space<vmem>>, %arg2: memref<4x128xf32, #tpu.memory_space<vmem>>, %arg3: memref<3x128x128xf32, #tpu.memory_space<vmem>>, %arg4: memref<4x128xf32, #tpu.memory_space<vmem>>, %arg5: memref<8x128xf32, #tpu.memory_space<vmem>>) attributes {dimension_semantics = [#tpu.dimension_semantics<parallel>], iteration_bounds = array<i64: 1>, scalar_prefetch = 0 : i64, scratch_operands = 0 : i64, tpu.core_type = #tpu.core_type<tc>, window_params = [{transform_indices = @transform_0, window_bounds = array<i64: 8, 4>}, {pipeline_mode = #tpu.pipeline_mode<synchronous>, transform_indices = @transform_1, window_bounds = array<i64: 4, 128>}, {pipeline_mode = #tpu.pipeline_mode<synchronous>, transform_indices = @transform_2, window_bounds = array<i64: 3, 128, 128>}, {pipeline_mode = #tpu.pipeline_mode<synchronous>, transform_indices = @transform_3, window_bounds = array<i64: 4, 128>}, {transform_indices = @transform_4, window_bounds = array<i64: 8, 128>}]} {
    %c0 = arith.constant 0 : index
    %c0_0 = arith.constant 0 : index
    %0 = vector.load %arg1[%c0, %c0_0] : memref<8x4xf32, #tpu.memory_space<vmem>>, vector<8x4xf32>
    %c0_1 = arith.constant 0 : index
    %c0_2 = arith.constant 0 : index
    %1 = vector.load %arg2[%c0_1, %c0_2] : memref<4x128xf32, #tpu.memory_space<vmem>>, vector<4x128xf32>
    %cst = arith.constant dense<0.000000e+00> : vector<8x128xf32>
    %2 = tpu.matmul %0, %1, %cst {dimension_numbers = #tpu.dot_dimension_numbers<[1], [0], [0], [1], [0, 0, 1, 1], [], []>} : vector<8x4xf32>, vector<4x128xf32>, vector<8x128xf32> -> vector<8x128xf32>
    %c0_3 = arith.constant 0 : index
    %c0_4 = arith.constant 0 : index
    %3 = vector.load %arg4[%c0_3, %c0_4] : memref<4x128xf32, #tpu.memory_space<vmem>>, vector<1x128xf32>
    %4 = vector.broadcast %3 : vector<1x128xf32> to vector<8x128xf32>
    %5 = arith.addf %2, %4 : vector<8x128xf32>
    %cst_5 = arith.constant 0.000000e+00 : f32
    %6 = vector.broadcast %cst_5 : f32 to vector<8x128xf32>
    %7 = arith.maximumf %5, %6 : vector<8x128xf32>
    %c0_6 = arith.constant 0 : index
    %c0_7 = arith.constant 0 : index
    %c0_8 = arith.constant 0 : index
    %8 = vector.load %arg3[%c0_6, %c0_7, %c0_8] : memref<3x128x128xf32, #tpu.memory_space<vmem>>, vector<1x128x128xf32>
    %9 = vector.shape_cast %8 : vector<1x128x128xf32> to vector<128x128xf32>
    %cst_9 = arith.constant dense<0.000000e+00> : vector<8x128xf32>
    %10 = tpu.matmul %7, %9, %cst_9 {dimension_numbers = #tpu.dot_dimension_numbers<[1], [0], [0], [1], [0, 0, 1, 1], [], []>} : vector<8x128xf32>, vector<128x128xf32>, vector<8x128xf32> -> vector<8x128xf32>
    %c1 = arith.constant 1 : index
    %c0_10 = arith.constant 0 : index
    %11 = vector.load %arg4[%c1, %c0_10] : memref<4x128xf32, #tpu.memory_space<vmem>>, vector<1x128xf32>
    %12 = vector.broadcast %11 : vector<1x128xf32> to vector<8x128xf32>
    %13 = arith.addf %10, %12 : vector<8x128xf32>
    %cst_11 = arith.constant 0.000000e+00 : f32
    %14 = vector.broadcast %cst_11 : f32 to vector<8x128xf32>
    %15 = arith.maximumf %13, %14 : vector<8x128xf32>
    %c1_12 = arith.constant 1 : index
    %c0_13 = arith.constant 0 : index
    %c0_14 = arith.constant 0 : index
    %16 = vector.load %arg3[%c1_12, %c0_13, %c0_14] : memref<3x128x128xf32, #tpu.memory_space<vmem>>, vector<1x128x128xf32>
    %17 = vector.shape_cast %16 : vector<1x128x128xf32> to vector<128x128xf32>
    %cst_15 = arith.constant dense<0.000000e+00> : vector<8x128xf32>
    %18 = tpu.matmul %15, %17, %cst_15 {dimension_numbers = #tpu.dot_dimension_numbers<[1], [0], [0], [1], [0, 0, 1, 1], [], []>} : vector<8x128xf32>, vector<128x128xf32>, vector<8x128xf32> -> vector<8x128xf32>
    %c2 = arith.constant 2 : index
    %c0_16 = arith.constant 0 : index
    %19 = vector.load %arg4[%c2, %c0_16] : memref<4x128xf32, #tpu.memory_space<vmem>>, vector<1x128xf32>
    %20 = vector.broadcast %19 : vector<1x128xf32> to vector<8x128xf32>
    %21 = arith.addf %18, %20 : vector<8x128xf32>
    %cst_17 = arith.constant 0.000000e+00 : f32
    %22 = vector.broadcast %cst_17 : f32 to vector<8x128xf32>
    %23 = arith.maximumf %21, %22 : vector<8x128xf32>
    %c2_18 = arith.constant 2 : index
    %c0_19 = arith.constant 0 : index
    %c0_20 = arith.constant 0 : index
    %24 = vector.load %arg3[%c2_18, %c0_19, %c0_20] : memref<3x128x128xf32, #tpu.memory_space<vmem>>, vector<1x128x128xf32>
    %25 = vector.shape_cast %24 : vector<1x128x128xf32> to vector<128x128xf32>
    %cst_21 = arith.constant dense<0.000000e+00> : vector<8x128xf32>
    %26 = tpu.matmul %23, %25, %cst_21 {dimension_numbers = #tpu.dot_dimension_numbers<[1], [0], [0], [1], [0, 0, 1, 1], [], []>} : vector<8x128xf32>, vector<128x128xf32>, vector<8x128xf32> -> vector<8x128xf32>
    %c3 = arith.constant 3 : index
    %c0_22 = arith.constant 0 : index
    %27 = vector.load %arg4[%c3, %c0_22] : memref<4x128xf32, #tpu.memory_space<vmem>>, vector<1x128xf32>
    %28 = vector.broadcast %27 : vector<1x128xf32> to vector<8x128xf32>
    %29 = arith.addf %26, %28 : vector<8x128xf32>
    %c0_23 = arith.constant 0 : index
    %c0_24 = arith.constant 0 : index
    %30 = vector.load %arg5[%c0_23, %c0_24] : memref<8x128xf32, #tpu.memory_space<vmem>>, vector<8x128xf32>
    tpu.vector_store %arg5[%c0_23, %c0_24], %29 {strides = array<i32>} : memref<8x128xf32, #tpu.memory_space<vmem>>, vector<8x128xf32>,
    return
  }
  func.func @transform_0(%arg0: i32) -> (i32, i32) {
    %c0_i32 = arith.constant 0 : i32
    %c0_i32_0 = arith.constant 0 : i32
    return %arg0, %c0_i32 : i32, i32
  }
  func.func @transform_1(%arg0: i32) -> (i32, i32) {
    %c0_i32 = arith.constant 0 : i32
    %c0_i32_0 = arith.constant 0 : i32
    %c0_i32_1 = arith.constant 0 : i32
    return %c0_i32, %c0_i32_0 : i32, i32
  }
  func.func @transform_2(%arg0: i32) -> (i32, i32, i32) {
    %c0_i32 = arith.constant 0 : i32
    %c0_i32_0 = arith.constant 0 : i32
    %c0_i32_1 = arith.constant 0 : i32
    %c0_i32_2 = arith.constant 0 : i32
    return %c0_i32, %c0_i32_0, %c0_i32_1 : i32, i32, i32
  }
  func.func @transform_3(%arg0: i32) -> (i32, i32) {
    %c0_i32 = arith.constant 0 : i32
    %c0_i32_0 = arith.constant 0 : i32
    %c0_i32_1 = arith.constant 0 : i32
    return %c0_i32, %c0_i32_0 : i32, i32
  }
  func.func @transform_4(%arg0: i32) -> (i32, i32) {
    %c0_i32 = arith.constant 0 : i32
    %c0_i32_0 = arith.constant 0 : i32
    return %arg0, %c0_i32 : i32, i32
  }
}

</mosaic_0001>

<llo_original>
// kernel: dqn_forward.1
$region0: #{dqn_forward.1}
  #allocation0 [shape = 'u32[]', space=smem, size = 0x4, offset = 0x4, fixed_abs, tag = 'smem constant byte address 0x4 - core index']
  #allocation1 [shape = 'u32[144,128]{1,0:T(1,128)}', space=vmem, size = 0x12000, scoped, tag = 'internal scratch']
  %s0 = inlined_call_operand.vmem [shape: f32[8,4], index: 0, kind: input, shape index: {}]
  %s1 = inlined_call_operand.vmem [shape: f32[4,128], index: 1, kind: input, shape index: {}]
  %s2 = inlined_call_operand.vmem [shape: f32[3,128,128], index: 2, kind: input, shape index: {}]
  %s3 = inlined_call_operand.vmem [shape: f32[4,128], index: 3, kind: input, shape index: {}]
  %s4 = inlined_call_operand.vmem [shape: f32[8,128], index: 4, kind: output, shape index: {}]
  %s5 = sld [smem:[#allocation0]]
  $region26: #{dqn_forward.1} parent=0
    _
  %s7 = ssub.s32 1, %s5
  %s8 = scalar_select 0, %s7, %s5
  // Predicated region
  $region2: #{dqn_forward.1} parent=0 // pred_check
    _
  $region3: #{dqn_forward.1} parent=0 // pred_check_branch
    %10 = sbr.rel (0) target = $region5
  $region4: #{dqn_forward.1} parent=0 // pred_region
    _
  $region5: #{dqn_forward.1} parent=0 // pred_fallthru
    _
  // Predicated region
  $region6: #{dqn_forward.1} parent=0 // pred_check
    _
  $region7: #{dqn_forward.1} parent=0 // pred_check_branch
    %12 = sbr.rel (0) target = $region9
  $region8: #{dqn_forward.1} parent=0 // pred_region
    _
  $region9: #{dqn_forward.1} parent=0 // pred_fallthru
    _
  // Predicated region
  $region10: #{dqn_forward.1} parent=0 // pred_check
    _
  $region11: #{dqn_forward.1} parent=0 // pred_check_branch
    %14 = sbr.rel (0) target = $region13
  $region12: #{dqn_forward.1} parent=0 // pred_region
    _
  $region13: #{dqn_forward.1} parent=0 // pred_fallthru
    _
  // Predicated region
  $region14: #{dqn_forward.1} parent=0 // pred_check
    _
  $region15: #{dqn_forward.1} parent=0 // pred_check_branch
    %16 = sbr.rel (0) target = $region17
  $region16: #{dqn_forward.1} parent=0 // pred_region
    _
  $region17: #{dqn_forward.1} parent=0 // pred_fallthru
    _
  %v17 = vld [vmem:[%s0] sm:$0xff]
  %v18 = vld [vmem:[%s1] sm:$0xf]
  %v19 = vld [vmem:[%s3] sm:$0x1]
  %v20 = vlaneseq
  %v21 = vshrl.u32 %v20, 7
  %v22 = vsub.s32 0, %v21
  %v23 = vrot.slane %v19, %v22
  %vm24 = vcmask 31744
  %v26 = vsel %vm24, %v17, 0
  %vm28 = vcmask 1043456
  %v30 = vsel %vm28, %v18, 0
  %32 = vmatprep.subr.mxu0 0.0
  %33 = vmatpush1.msra.mxu0 %v30
  %34 = vmatprep.subr.mxu0 0.0
  %35 = vmatpush1.msra.mxu0 0.0
  %36 = vmatprep.subr.mxu0 0.0
  %37 = vmatpush1.msra.mxu0 0.0
  %38 = vmatprep.subr.mxu0 0.0
  %39 = vmatpush1.msra.mxu0 0.0
  %40 = vmatprep.subr.mxu0 0.0
  %41 = vmatpush1.msra.mxu0 0.0
  %42 = vmatprep.subr.mxu0 0.0
  %43 = vmatpush1.msra.mxu0 0.0
  %44 = vmatprep.subr.mxu0 0.0
  %45 = vmatpush1.msra.mxu0 0.0
  %46 = vmatprep.subr.mxu0 0.0
  %47 = vmatpush1.msra.mxu0 0.0
  %48 = vmatprep.subr.mxu0 0.0
  %49 = vmatpush1.msra.mxu0 0.0
  %50 = vmatprep.subr.mxu0 0.0
  %51 = vmatpush1.msra.mxu0 0.0
  %52 = vmatprep.subr.mxu0 0.0
  %53 = vmatpush1.msra.mxu0 0.0
  %54 = vmatprep.subr.mxu0 0.0
  %55 = vmatpush1.msra.mxu0 0.0
  %56 = vmatprep.subr.mxu0 0.0
  %57 = vmatpush1.msra.mxu0 0.0
  %58 = vmatprep.subr.mxu0 0.0
  %59 = vmatpush1.msra.mxu0 0.0
  %60 = vmatprep.subr.mxu0 0.0
  %61 = vmatpush1.msra.mxu0 0.0
  %62 = vmatprep.subr.mxu0 0.0
  %63 = vmatpush1.msra.mxu0 0.0
  %64 = vmatprep.subr.mxu0 0.0
  %65 = vmatpush1.msra.mxu0 0.0
  %66 = vmatprep.subr.mxu0 0.0
  %67 = vmatpush1.msra.mxu0 0.0
  %68 = vmatprep.subr.mxu0 0.0
  %69 = vmatpush1.msra.mxu0 0.0
  %70 = vmatprep.subr.mxu0 0.0
  %71 = vmatpush1.msra.mxu0 0.0
  %72 = vmatprep.subr.mxu0 0.0
  %73 = vmatpush1.msra.mxu0 0.0
  %74 = vmatprep.subr.mxu0 0.0
  %75 = vmatpush1.msra.mxu0 0.0
  %76 = vmatprep.subr.mxu0 0.0
  %77 = vmatpush1.msra.mxu0 0.0
  %78 = vmatprep.subr.mxu0 0.0
  %79 = vmatpush1.msra.mxu0 0.0
  %80 = vmatprep.subr.mxu0 0.0
  %81 = vmatpush1.msra.mxu0 0.0
  %82 = vmatprep.subr.mxu0 0.0
  %83 = vmatpush1.msra.mxu0 0.0
  %84 = vmatprep.subr.mxu0 0.0
  %85 = vmatpush1.msra.mxu0 0.0
  %86 = vmatprep.subr.mxu0 0.0
  %87 = vmatpush1.msra.mxu0 0.0
  %88 = vmatprep.subr.mxu0 0.0
  %89 = vmatpush1.msra.mxu0 0.0
  %90 = vmatprep.subr.mxu0 0.0
  %91 = vmatpush1.msra.mxu0 0.0
  %92 = vmatprep.subr.mxu0 0.0
  %93 = vmatpush1.msra.mxu0 0.0
  %94 = vmatprep.subr.mxu0 0.0
  %95 = vmatpush1.msra.mxu0 0.0
  %96 = vmatprep.mubr.f32.mxu0 0.0
  %97 = vmatmul.mubr.f32.gmra.mrb[0].mxu0 %v26
  %v98 = vpop.f32.mrb[0].mxu0
  %v99 = vadd.f32 %v23, %v98
  %v100 = vpop.f32.mrb[0].mxu0
  %101 = vdwg.mxu0
  %v102 = vmax.f32 %v99, 0.0
  %v103 = vld [vmem:[%s2] sm:$0xff]
  %v104 = vld [vmem:[%s2 + $0x8] sm:$0xff]
  %v105 = vld [vmem:[%s2 + $0x10] sm:$0xff]
  %v106 = vld [vmem:[%s2 + $0x18] sm:$0xff]
  %v107 = vld [vmem:[%s2 + $0x20] sm:$0xff]
  %v108 = vld [vmem:[%s2 + $0x28] sm:$0xff]
  %v109 = vld [vmem:[%s2 + $0x30] sm:$0xff]
  %v110 = vld [vmem:[%s2 + $0x38] sm:$0xff]
  %v111 = vld [vmem:[%s2 + $0x40] sm:$0xff]
  %v112 = vld [vmem:[%s2 + $0x48] sm:$0xff]
  %v113 = vld [vmem:[%s2 + $0x50] sm:$0xff]
  %v114 = vld [vmem:[%s2 + $0x58] sm:$0xff]
  %v115 = vld [vmem:[%s2 + $0x60] sm:$0xff]
  %v116 = vld [vmem:[%s2 + $0x68] sm:$0xff]
  %v117 = vld [vmem:[%s2 + $0x70] sm:$0xff]
  %v118 = vld [vmem:[%s2 + $0x78] sm:$0xff]
  %v119 = vld [vmem:[%s3 + $0x1] sm:$0x1]
  %v120 = vlaneseq
  %v121 = vshrl.u32 %v120, 7
  %v122 = vsub.s32 0, %v121
  %v123 = vrot.slane %v119, %v122
  %124 = vmatprep.subr.mxu0 0.0
  %125 = vmatpush1.msra.mxu0 %v103
  %126 = vmatprep.subr.mxu0 0.0
  %127 = vmatpush1.msra.mxu0 %v104
  %128 = vmatprep.subr.mxu0 0.0
  %129 = vmatpush1.msra.mxu0 %v105
  %130 = vmatprep.subr.mxu0 0.0
  %131 = vmatpush1.msra.mxu0 %v106
  %132 = vmatprep.subr.mxu0 0.0
  %133 = vmatpush1.msra.mxu0 %v107
  %134 = vmatprep.subr.mxu0 0.0
  %135 = vmatpush1.msra.mxu0 %v108
  %136 = vmatprep.subr.mxu0 0.0
  %137 = vmatpush1.msra.mxu0 %v109
  %138 = vmatprep.subr.mxu0 0.0
  %139 = vmatpush1.msra.mxu0 %v110
  %140 = vmatprep.subr.mxu0 0.0
  %141 = vmatpush1.msra.mxu0 %v111
  %142 = vmatprep.subr.mxu0 0.0
  %143 = vmatpush1.msra.mxu0 %v112
  %144 = vmatprep.subr.mxu0 0.0
  %145 = vmatpush1.msra.mxu0 %v113
  %146 = vmatprep.subr.mxu0 0.0
  %147 = vmatpush1.msra.mxu0 %v114
  %148 = vmatprep.subr.mxu0 0.0
  %149 = vmatpush1.msra.mxu0 %v115
  %150 = vmatprep.subr.mxu0 0.0
  %151 = vmatpush1.msra.mxu0 %v116
  %152 = vmatprep.subr.mxu0 0.0
  %153 = vmatpush1.msra.mxu0 %v117
  %154 = vmatprep.subr.mxu0 0.0
  %155 = vmatpush1.msra.mxu0 %v118
  %156 = vmatprep.subr.mxu0 0.0
  %157 = vmatpush1.msra.mxu0 0.0
  %158 = vmatprep.subr.mxu0 0.0
  %159 = vmatpush1.msra.mxu0 0.0
  %160 = vmatprep.subr.mxu0 0.0
  %161 = vmatpush1.msra.mxu0 0.0
  %162 = vmatprep.subr.mxu0 0.0
  %163 = vmatpush1.msra.mxu0 0.0
  %164 = vmatprep.subr.mxu0 0.0
  %165 = vmatpush1.msra.mxu0 0.0
  %166 = vmatprep.subr.mxu0 0.0
  %167 = vmatpush1.msra.mxu0 0.0
  %168 = vmatprep.subr.mxu0 0.0
  %169 = vmatpush1.msra.mxu0 0.0
  %170 = vmatprep.subr.mxu0 0.0
  %171 = vmatpush1.msra.mxu0 0.0
  %172 = vmatprep.subr.mxu0 0.0
  %173 = vmatpush1.msra.mxu0 0.0
  %174 = vmatprep.subr.mxu0 0.0
  %175 = vmatpush1.msra.mxu0 0.0
  %176 = vmatprep.subr.mxu0 0.0
  %177 = vmatpush1.msra.mxu0 0.0
  %178 = vmatprep.subr.mxu0 0.0
  %179 = vmatpush1.msra.mxu0 0.0
  %180 = vmatprep.subr.mxu0 0.0
  %181 = vmatpush1.msra.mxu0 0.0
  %182 = vmatprep.subr.mxu0 0.0
  %183 = vmatpush1.msra.mxu0 0.0
  %184 = vmatprep.subr.mxu0 0.0
  %185 = vmatpush1.msra.mxu0 0.0
  %186 = vmatprep.subr.mxu0 0.0
  %187 = vmatpush1.msra.mxu0 0.0
  %188 = vmatprep.mubr.f32.mxu0 0.0
  %189 = vmatmul.mubr.f32.gmra.mrb[0].mxu0 %v102
  %v190 = vpop.f32.mrb[0].mxu0
  %v191 = vadd.f32 %v123, %v190
  %v192 = vpop.f32.mrb[0].mxu0
  %193 = vdwg.mxu0
  %v194 = vmax.f32 %v191, 0.0
  %s195 = scalar_lea.vmem %s2, 128
  %v196 = vld [vmem:[%s195] sm:$0xff]
  %v197 = vld [vmem:[%s195 + $0x8] sm:$0xff]
  %v198 = vld [vmem:[%s195 + $0x10] sm:$0xff]
  %v199 = vld [vmem:[%s195 + $0x18] sm:$0xff]
  %v200 = vld [vmem:[%s195 + $0x20] sm:$0xff]
  %v201 = vld [vmem:[%s195 + $0x28] sm:$0xff]
  %v202 = vld [vmem:[%s195 + $0x30] sm:$0xff]
  %v203 = vld [vmem:[%s195 + $0x38] sm:$0xff]
  %v204 = vld [vmem:[%s195 + $0x40] sm:$0xff]
  %v205 = vld [vmem:[%s195 + $0x48] sm:$0xff]
  %v206 = vld [vmem:[%s195 + $0x50] sm:$0xff]
  %v207 = vld [vmem:[%s195 + $0x58] sm:$0xff]
  %v208 = vld [vmem:[%s195 + $0x60] sm:$0xff]
  %v209 = vld [vmem:[%s195 + $0x68] sm:$0xff]
  %v210 = vld [vmem:[%s195 + $0x70] sm:$0xff]
  %v211 = vld [vmem:[%s195 + $0x78] sm:$0xff]
  %v212 = vld [vmem:[%s3 + $0x2] sm:$0x1]
  %v213 = vlaneseq
  %v214 = vshrl.u32 %v213, 7
  %v215 = vsub.s32 0, %v214
  %v216 = vrot.slane %v212, %v215
  %217 = vmatprep.subr.mxu0 0.0
  %218 = vmatpush1.msra.mxu0 %v196
  %219 = vmatprep.subr.mxu0 0.0
  %220 = vmatpush1.msra.mxu0 %v197
  %221 = vmatprep.subr.mxu0 0.0
  %222 = vmatpush1.msra.mxu0 %v198
  %223 = vmatprep.subr.mxu0 0.0
  %224 = vmatpush1.msra.mxu0 %v199
  %225 = vmatprep.subr.mxu0 0.0
  %226 = vmatpush1.msra.mxu0 %v200
  %227 = vmatprep.subr.mxu0 0.0
  %228 = vmatpush1.msra.mxu0 %v201
  %229 = vmatprep.subr.mxu0 0.0
  %230 = vmatpush1.msra.mxu0 %v202
  %231 = vmatprep.subr.mxu0 0.0
  %232 = vmatpush1.msra.mxu0 %v203
  %233 = vmatprep.subr.mxu0 0.0
  %234 = vmatpush1.msra.mxu0 %v204
  %235 = vmatprep.subr.mxu0 0.0
  %236 = vmatpush1.msra.mxu0 %v205
  %237 = vmatprep.subr.mxu0 0.0
  %238 = vmatpush1.msra.mxu0 %v206
  %239 = vmatprep.subr.mxu0 0.0
  %240 = vmatpush1.msra.mxu0 %v207
  %241 = vmatprep.subr.mxu0 0.0
  %242 = vmatpush1.msra.mxu0 %v208
  %243 = vmatprep.subr.mxu0 0.0
  %244 = vmatpush1.msra.mxu0 %v209
  %245 = vmatprep.subr.mxu0 0.0
  %246 = vmatpush1.msra.mxu0 %v210
  %247 = vmatprep.subr.mxu0 0.0
  %248 = vmatpush1.msra.mxu0 %v211
  %249 = vmatprep.subr.mxu0 0.0
  %250 = vmatpush1.msra.mxu0 0.0
  %251 = vmatprep.subr.mxu0 0.0
  %252 = vmatpush1.msra.mxu0 0.0
  %253 = vmatprep.subr.mxu0 0.0
  %254 = vmatpush1.msra.mxu0 0.0
  %255 = vmatprep.subr.mxu0 0.0
  %256 = vmatpush1.msra.mxu0 0.0
  %257 = vmatprep.subr.mxu0 0.0
  %258 = vmatpush1.msra.mxu0 0.0
  %259 = vmatprep.subr.mxu0 0.0
  %260 = vmatpush1.msra.mxu0 0.0
  %261 = vmatprep.subr.mxu0 0.0
  %262 = vmatpush1.msra.mxu0 0.0
  %263 = vmatprep.subr.mxu0 0.0
  %264 = vmatpush1.msra.mxu0 0.0
  %265 = vmatprep.subr.mxu0 0.0
  %266 = vmatpush1.msra.mxu0 0.0
  %267 = vmatprep.subr.mxu0 0.0
  %268 = vmatpush1.msra.mxu0 0.0
  %269 = vmatprep.subr.mxu0 0.0
  %270 = vmatpush1.msra.mxu0 0.0
  %271 = vmatprep.subr.mxu0 0.0
  %272 = vmatpush1.msra.mxu0 0.0
  %273 = vmatprep.subr.mxu0 0.0
  %274 = vmatpush1.msra.mxu0 0.0
  %275 = vmatprep.subr.mxu0 0.0
  %276 = vmatpush1.msra.mxu0 0.0
  %277 = vmatprep.subr.mxu0 0.0
  %278 = vmatpush1.msra.mxu0 0.0
  %279 = vmatprep.subr.mxu0 0.0
  %280 = vmatpush1.msra.mxu0 0.0
  %281 = vmatprep.mubr.f32.mxu0 0.0
  %282 = vmatmul.mubr.f32.gmra.mrb[0].mxu0 %v194
  %v283 = vpop.f32.mrb[0].mxu0
  %v284 = vadd.f32 %v216, %v283
  %v285 = vpop.f32.mrb[0].mxu0
  %286 = vdwg.mxu0
  %v287 = vmax.f32 %v284, 0.0
  %s288 = scalar_lea.vmem %s2, 256
  %v289 = vld [vmem:[%s288] sm:$0xff]
  %v290 = vld [vmem:[%s288 + $0x8] sm:$0xff]
  %v291 = vld [vmem:[%s288 + $0x10] sm:$0xff]
  %v292 = vld [vmem:[%s288 + $0x18] sm:$0xff]
  %v293 = vld [vmem:[%s288 + $0x20] sm:$0xff]
  %v294 = vld [vmem:[%s288 + $0x28] sm:$0xff]
  %v295 = vld [vmem:[%s288 + $0x30] sm:$0xff]
  %v296 = vld [vmem:[%s288 + $0x38] sm:$0xff]
  %v297 = vld [vmem:[%s288 + $0x40] sm:$0xff]
  %v298 = vld [vmem:[%s288 + $0x48] sm:$0xff]
  %v299 = vld [vmem:[%s288 + $0x50] sm:$0xff]
  %v300 = vld [vmem:[%s288 + $0x58] sm:$0xff]
  %v301 = vld [vmem:[%s288 + $0x60] sm:$0xff]
  %v302 = vld [vmem:[%s288 + $0x68] sm:$0xff]
  %v303 = vld [vmem:[%s288 + $0x70] sm:$0xff]
  %v304 = vld [vmem:[%s288 + $0x78] sm:$0xff]
  %v305 = vld [vmem:[%s3 + $0x3] sm:$0x1]
  %v306 = vlaneseq
  %v307 = vshrl.u32 %v306, 7
  %v308 = vsub.s32 0, %v307
  %v309 = vrot.slane %v305, %v308
  %310 = vmatprep.subr.mxu0 0.0
  %311 = vmatpush1.msra.mxu0 %v289
  %312 = vmatprep.subr.mxu0 0.0
  %313 = vmatpush1.msra.mxu0 %v290
  %314 = vmatprep.subr.mxu0 0.0
  %315 = vmatpush1.msra.mxu0 %v291
  %316 = vmatprep.subr.mxu0 0.0
  %317 = vmatpush1.msra.mxu0 %v292
  %318 = vmatprep.subr.mxu0 0.0
  %319 = vmatpush1.msra.mxu0 %v293
  %320 = vmatprep.subr.mxu0 0.0
  %321 = vmatpush1.msra.mxu0 %v294
  %322 = vmatprep.subr.mxu0 0.0
  %323 = vmatpush1.msra.mxu0 %v295
  %324 = vmatprep.subr.mxu0 0.0
  %325 = vmatpush1.msra.mxu0 %v296
  %326 = vmatprep.subr.mxu0 0.0
  %327 = vmatpush1.msra.mxu0 %v297
  %328 = vmatprep.subr.mxu0 0.0
  %329 = vmatpush1.msra.mxu0 %v298
  %330 = vmatprep.subr.mxu0 0.0
  %331 = vmatpush1.msra.mxu0 %v299
  %332 = vmatprep.subr.mxu0 0.0
  %333 = vmatpush1.msra.mxu0 %v300
  %334 = vmatprep.subr.mxu0 0.0
  %335 = vmatpush1.msra.mxu0 %v301
  %336 = vmatprep.subr.mxu0 0.0
  %337 = vmatpush1.msra.mxu0 %v302
  %338 = vmatprep.subr.mxu0 0.0
  %339 = vmatpush1.msra.mxu0 %v303
  %340 = vmatprep.subr.mxu0 0.0
  %341 = vmatpush1.msra.mxu0 %v304
  %342 = vmatprep.subr.mxu0 0.0
  %343 = vmatpush1.msra.mxu0 0.0
  %344 = vmatprep.subr.mxu0 0.0
  %345 = vmatpush1.msra.mxu0 0.0
  %346 = vmatprep.subr.mxu0 0.0
  %347 = vmatpush1.msra.mxu0 0.0
  %348 = vmatprep.subr.mxu0 0.0
  %349 = vmatpush1.msra.mxu0 0.0
  %350 = vmatprep.subr.mxu0 0.0
  %351 = vmatpush1.msra.mxu0 0.0
  %352 = vmatprep.subr.mxu0 0.0
  %353 = vmatpush1.msra.mxu0 0.0
  %354 = vmatprep.subr.mxu0 0.0
  %355 = vmatpush1.msra.mxu0 0.0
  %356 = vmatprep.subr.mxu0 0.0
  %357 = vmatpush1.msra.mxu0 0.0
  %358 = vmatprep.subr.mxu0 0.0
  %359 = vmatpush1.msra.mxu0 0.0
  %360 = vmatprep.subr.mxu0 0.0
  %361 = vmatpush1.msra.mxu0 0.0
  %362 = vmatprep.subr.mxu0 0.0
  %363 = vmatpush1.msra.mxu0 0.0
  %364 = vmatprep.subr.mxu0 0.0
  %365 = vmatpush1.msra.mxu0 0.0
  %366 = vmatprep.subr.mxu0 0.0
  %367 = vmatpush1.msra.mxu0 0.0
  %368 = vmatprep.subr.mxu0 0.0
  %369 = vmatpush1.msra.mxu0 0.0
  %370 = vmatprep.subr.mxu0 0.0
  %371 = vmatpush1.msra.mxu0 0.0
  %372 = vmatprep.subr.mxu0 0.0
  %373 = vmatpush1.msra.mxu0 0.0
  %374 = vmatprep.mubr.f32.mxu0 0.0
  %375 = vmatmul.mubr.f32.gmra.mrb[0].mxu0 %v287
  %v376 = vpop.f32.mrb[0].mxu0
  %v377 = vadd.f32 %v309, %v376
  %v378 = vpop.f32.mrb[0].mxu0
  %379 = vdwg.mxu0
  %380 = vst [vmem:[%s4] sm:$0xff] %v377
  // Predicated region
  $region18: #{dqn_forward.1} parent=0 // pred_check
    _
  $region19: #{dqn_forward.1} parent=0 // pred_check_branch
    %382 = sbr.rel (0) target = $region21
  $region20: #{dqn_forward.1} parent=0 // pred_region
    _
  $region21: #{dqn_forward.1} parent=0 // pred_fallthru
    _
  // Predicated region
  $region22: #{dqn_forward.1} parent=0 // pred_check
    _
  $region23: #{dqn_forward.1} parent=0 // pred_check_branch
    %384 = sbr.rel (0) target = $region25
  $region24: #{dqn_forward.1} parent=0 // pred_region
    _
  $region25: #{dqn_forward.1} parent=0 // pred_fallthru
    _

</llo_original>
